<compile_context>
chip_gen: v7x
topology: tpu7x:2x2x1
jax: 0.10.0
libtpu: 0.0.40
codegen_flags: <defaults>
</compile_context>

<pallas_src>
import functools

import jax
import jax.numpy as jnp
from jax.experimental import pallas as pl
from jax.experimental.pallas import tpu as pltpu


_VMEM_BUDGET_BYTES = 44 * 1024 * 1024     # conservative: fits v7x's 64 MiB/TC with headroom
_SMALL_PATH_MAX_B = 512                   # rows
_SMALL_PATH_MAX_BYTES = 16 * 1024 * 1024  # whole-problem footprint for the no-grid path


def _round_up(x, m):
    return ((x + m - 1) // m) * m


# ---------------------------------------------------------------------------
# Kernels
# ---------------------------------------------------------------------------

def _linear_whole_kernel(x_ref, wt_ref, b_ref, o_ref):
    # x: [B, D], wt: [D, Q] (pre-transposed), b: [1, Q], o: [B, Q]
    acc = jnp.dot(x_ref[...], wt_ref[...], preferred_element_type=jnp.float32)
    o_ref[...] = (acc + b_ref[...].astype(jnp.float32)).astype(o_ref.dtype)


def _linear_tiled_kernel(x_ref, wt_ref, b_ref, o_ref, acc_ref):
    # Grid: (batch blocks, Q blocks, K blocks). K is last ("arbitrary") -> accumulate.
    k = pl.program_id(2)

    @pl.when(k == 0)
    def _():
        acc_ref[...] = jnp.zeros_like(acc_ref)

    acc_ref[...] += jnp.dot(x_ref[...], wt_ref[...],
                            preferred_element_type=jnp.float32)

    @pl.when(k == pl.num_programs(2) - 1)
    def _():
        o_ref[...] = (acc_ref[...] + b_ref[...].astype(jnp.float32)).astype(o_ref.dtype)


# ---------------------------------------------------------------------------
# Parameter preparation (one-time; hoists the transpose out of the forward)
# ---------------------------------------------------------------------------

def prepare_linear_params(w, b):
    """w: [Q, D] (PyTorch nn.Linear layout), b: [Q]  ->  (W^T [D, Q], b [1, Q])."""
    return jnp.transpose(w), b.reshape(1, -1)


# ---------------------------------------------------------------------------
# Tile selection with explicit VMEM accounting
# ---------------------------------------------------------------------------

def _choose_tiles(B, D, Q, itemsize, out_itemsize, vmem_budget):
    # Start fully resident along K and Q; tile them only if the weight block is big.
    tk, tn = D, Q
    weight_budget = vmem_budget // 3
    if tk * tn * itemsize > weight_budget and Q > 256:
        tn = 256            # multiple of 128 (and of 256 for the 256x256 MXU)
    if tk * tn * itemsize > weight_budget and D > 512:
        tk = 512            # K-tiling kicks in; accumulator handles correctness

    # Batch tile: target a multi-MiB x tile so per-grid-step overhead amortizes.
    target_x_bytes = 4 << 20
    tm = target_x_bytes // max(1, tk * itemsize)
    tm = max(256, min(8192, _round_up(int(tm), 8)))
    tm = min(tm, _round_up(B, 8))

    # Balance the batch grid to an even number of blocks (v7x: 2 TensorCores).
    nb = -(-B // tm)
    if nb > 1:
        nb = _round_up(nb, 2)
        tm = max(8, _round_up(-(-B // nb), 8))

    def footprint(tm_):
        io = 2 * (tm_ * tk * itemsize          # x tile, double-buffered
                  + tk * tn * itemsize         # W^T tile
                  + tn * itemsize              # bias tile
                  + tm_ * tn * out_itemsize)   # out tile
        return io + tm_ * tn * 4               # + f32 accumulator scratch

    while footprint(tm) > vmem_budget and tm > 8:
        tm = max(8, _round_up(tm // 2, 8))

    return tm, tn, tk, footprint(tm)


# ---------------------------------------------------------------------------
# Forward
# ---------------------------------------------------------------------------

@functools.partial(jax.jit, static_argnames=("compute_in_bf16", "prefer_xla_for_tiny"))
def model_linear_forward(x, w_t, b2, *, compute_in_bf16=False, prefer_xla_for_tiny=False):
    """y = x @ W^T + b.

    x:   [B, D]
    w_t: [D, Q]  (pre-transposed weight from prepare_linear_params)
    b2:  [1, Q]
    """
    B, D = x.shape
    _, Q = w_t.shape
    out_dtype = x.dtype

    if compute_in_bf16:
        x = x.astype(jnp.bfloat16)
        w_t = w_t.astype(jnp.bfloat16)

    itemsize = x.dtype.itemsize
    out_itemsize = jnp.dtype(out_dtype).itemsize
    total_bytes = (B * D + D * Q + Q) * itemsize + B * Q * out_itemsize
    flops = 2 * B * D * Q
    cost = pl.CostEstimate(flops=flops, transcendentals=0, bytes_accessed=total_bytes)

    if B <= _SMALL_PATH_MAX_B and total_bytes <= _SMALL_PATH_MAX_BYTES:
        if prefer_xla_for_tiny:
            # At e.g. 8x32x16 the Pallas call is pure launch overhead with sub-128-lane
            # masked stores; XLA's fused dot is at least as fast.
            return (jnp.dot(x, w_t, preferred_element_type=jnp.float32)
                    + b2.astype(jnp.float32)).astype(out_dtype)

        # Small path: no grid, no pipelining scaffolding — one DMA per operand,
        # everything resident in VMEM for a single kernel-body invocation.
        return pl.pallas_call(
            _linear_whole_kernel,
            out_shape=jax.ShapeDtypeStruct((B, Q), out_dtype),
            in_specs=[
                pl.BlockSpec(memory_space=pltpu.MemorySpace.VMEM),
                pl.BlockSpec(memory_space=pltpu.MemorySpace.VMEM),
                pl.BlockSpec(memory_space=pltpu.MemorySpace.VMEM),
            ],
            out_specs=pl.BlockSpec(memory_space=pltpu.MemorySpace.VMEM),
            cost_estimate=cost,
        )(x, w_t, b2)

    # ----------------------- general tiled path ------------------------------
    tm, tn, tk, footprint = _choose_tiles(B, D, Q, itemsize, out_itemsize,
                                          _VMEM_BUDGET_BYTES)
    grid = (pl.cdiv(B, tm), pl.cdiv(Q, tn), pl.cdiv(D, tk))

    return pl.pallas_call(
        _linear_tiled_kernel,
        out_shape=jax.ShapeDtypeStruct((B, Q), out_dtype),
        grid=grid,
        in_specs=[
            pl.BlockSpec((tm, tk), lambda i, j, k: (i, k)),   # x: tiled over batch / K
            pl.BlockSpec((tk, tn), lambda i, j, k: (k, j)),   # W^T: resident across batch steps
            pl.BlockSpec((1, tn), lambda i, j, k: (0, j)),    # bias: resident
        ],
        out_specs=pl.BlockSpec((tm, tn), lambda i, j, k: (i, j)),
        scratch_shapes=[pltpu.VMEM((tm, tn), jnp.float32)],
        compiler_params=pltpu.CompilerParams(
            # batch / Q blocks are independent -> shard across v7x's 2 TCs;
            # K is a reduction -> "arbitrary" (last grid axis).
            dimension_semantics=("parallel", "parallel", "arbitrary"),
            # Explicit limit from the computed footprint (scoped default is only
            # 16/32 MiB); +8 MiB headroom for Pallas-internal scratch.
            vmem_limit_bytes=int(footprint + (8 << 20)),
        ),
        cost_estimate=cost,
    )(x, w_t, b2)


# ---------------------------------------------------------------------------
# Self-test
# ---------------------------------------------------------------------------

if __name__ == "__main__":
    # Shapes consistent with the module: input_dim=32, n_quantiles=16, batch=8
    # (n_hidden is unused by Model_linear).
    batch, input_dim, n_quantiles = 8, 32, 16

    key = jax.random.PRNGKey(0)
    kx, kw, kb, kx2 = jax.random.split(key, 4)

    x = jax.random.normal(kx, (batch, input_dim), dtype=jnp.float32)
    bound = 1.0 / jnp.sqrt(jnp.float32(input_dim))
    w = jax.random.uniform(kw, (n_quantiles, input_dim), jnp.float32, -bound, bound)
    b = jax.random.uniform(kb, (n_quantiles,), jnp.float32, -bound, bound)

    # One-time parameter prep (transpose hoisted out of the forward path).
    w_t, b2 = prepare_linear_params(w, b)

    # Small / module-shape path (exercises the whole-array Pallas kernel).
    out = jax.block_until_ready(model_linear_forward(x, w_t, b2))
    ref = x @ w.T + b
    assert out.shape == (batch, n_quantiles)
    assert jnp.allclose(out, ref, atol=1e-5, rtol=1e-5)

    # Large-batch path (exercises the tiled accumulator kernel).
    big_B = 2048
    x_big = jax.random.normal(kx2, (big_B, input_dim), dtype=jnp.float32)
    out_big = jax.block_until_ready(model_linear_forward(x_big, w_t, b2))
    ref_big = x_big @ w.T + b
    assert out_big.shape == (big_B, n_quantiles)
    assert jnp.allclose(out_big, ref_big, atol=1e-4, rtol=1e-4)

    print("KERNEL_OK")
</pallas_src>

<mosaic_0001>
module attributes {stable_mosaic.version = 11 : i64} {
  func.func @_linear_whole_kernel(%arg0: memref<8x32xf32, #tpu.memory_space<vmem>>, %arg1: memref<32x16xf32, #tpu.memory_space<vmem>>, %arg2: memref<1x16xf32, #tpu.memory_space<vmem>>, %arg3: memref<8x16xf32, #tpu.memory_space<vmem>>) attributes {dimension_semantics = [], scalar_prefetch = 0 : i64, scratch_operands = 0 : i64, tpu.core_type = #tpu.core_type<tc>} {
    %c0 = arith.constant 0 : index
    %c0_0 = arith.constant 0 : index
    %0 = vector.load %arg0[%c0, %c0_0] : memref<8x32xf32, #tpu.memory_space<vmem>>, vector<8x32xf32>
    %c0_1 = arith.constant 0 : index
    %c0_2 = arith.constant 0 : index
    %1 = vector.load %arg1[%c0_1, %c0_2] : memref<32x16xf32, #tpu.memory_space<vmem>>, vector<32x16xf32>
    %cst = arith.constant dense<0.000000e+00> : vector<8x16xf32>
    %2 = tpu.matmul %0, %1, %cst {dimension_numbers = #tpu.dot_dimension_numbers<[1], [0], [0], [1], [0, 0, 1, 1], [], []>} : vector<8x32xf32>, vector<32x16xf32>, vector<8x16xf32> -> vector<8x16xf32>
    %c0_3 = arith.constant 0 : index
    %c0_4 = arith.constant 0 : index
    %3 = vector.load %arg2[%c0_3, %c0_4] : memref<1x16xf32, #tpu.memory_space<vmem>>, vector<1x16xf32>
    %4 = vector.broadcast %3 : vector<1x16xf32> to vector<8x16xf32>
    %5 = arith.addf %2, %4 : vector<8x16xf32>
    %c0_5 = arith.constant 0 : index
    %c0_6 = arith.constant 0 : index
    %6 = vector.load %arg3[%c0_5, %c0_6] : memref<8x16xf32, #tpu.memory_space<vmem>>, vector<8x16xf32>
    tpu.vector_store %arg3[%c0_5, %c0_6], %5 {strides = array<i32>} : memref<8x16xf32, #tpu.memory_space<vmem>>, vector<8x16xf32>,
    return
  }
}

</mosaic_0001>

<llo_original>
// kernel: model_linear_forward.1
$region0: #{model_linear_forward.1}
  #allocation0 [shape = 'u32[]', space=smem, size = 0x4, offset = 0x4, fixed_abs, tag = 'smem constant byte address 0x4 - core index']
  #allocation1 [shape = 'u32[144,128]{1,0:T(1,128)}', space=vmem, size = 0x12000, scoped, tag = 'internal scratch']
  %s0 = inlined_call_operand.vmem [shape: f32[8,32], index: 0, kind: input, shape index: {}]
  %s1 = inlined_call_operand.vmem [shape: f32[32,16], index: 1, kind: input, shape index: {}]
  %s2 = inlined_call_operand.vmem [shape: f32[1,16], index: 2, kind: input, shape index: {}]
  %s3 = inlined_call_operand.hbm [shape: f32[8,16], index: 3, kind: output, shape index: {}]
  %s4 = sld [smem:[#allocation0]]
  $region22: #{model_linear_forward.1} parent=0
    _
  %s6 = ssub.s32 1, %s4
  %s7 = scalar_select 0, %s6, %s4
  $region1: #{model_linear_forward.1} parent=0
    #allocation2 [shape = 'u8[4096]{0}', space=vmem, size = 0x1000, scoped, tag = 'output window, operand 0, single buffered']
    #allocation3 [shape = 's32[1]{0}', space=sflag, size = 0x4, scoped, tag = 'scoped memory for model_linear_forward.1']
    %8 = vsyncpa [#allocation3], 0
    // Predicated region
    $region2: #{model_linear_forward.1} parent=1 // pred_check
      _
    $region3: #{model_linear_forward.1} parent=1 // pred_check_branch
      %10 = sbr.rel (0) target = $region5
    $region4: #{model_linear_forward.1} parent=1 // pred_region
      _
    $region5: #{model_linear_forward.1} parent=1 // pred_fallthru
      _
    // Predicated region
    $region6: #{model_linear_forward.1} parent=1 // pred_check
      _
    $region7: #{model_linear_forward.1} parent=1 // pred_check_branch
      %12 = sbr.rel (0) target = $region9
    $region8: #{model_linear_forward.1} parent=1 // pred_region
      _
    $region9: #{model_linear_forward.1} parent=1 // pred_fallthru
      _
    // Predicated region
    $region10: #{model_linear_forward.1} parent=1 // pred_check
      _
    $region11: #{model_linear_forward.1} parent=1 // pred_check_branch
      %14 = sbr.rel (0) target = $region13
    $region12: #{model_linear_forward.1} parent=1 // pred_region
      _
    $region13: #{model_linear_forward.1} parent=1 // pred_fallthru
      _
    %v15 = vld [vmem:[%s0] sm:$0xff]
    %v16 = vld [vmem:[%s1] sm:$0xff]
    %v17 = vld [vmem:[%s1 + $0x8] sm:$0xff]
    %v18 = vld [vmem:[%s1 + $0x10] sm:$0xff]
    %v19 = vld [vmem:[%s1 + $0x18] sm:$0xff]
    %v20 = vld [vmem:[%s2] sm:$0x1]
    %v22 = vlaneseq
    %v23 = vshrl.u32 %v22, 7
    %v24 = vsub.s32 0, %v23
    %v25 = vrot.slane %v20, %v24
    %vm27 = vcmask 261120
    %v29 = vsel %vm27, %v15, 0
    %31 = vmatprep.subr.mxu0 0.0
    %32 = vmatpush1.msra.mxu0 %v16
    %33 = vmatprep.subr.mxu0 0.0
    %34 = vmatpush1.msra.mxu0 %v17
    %35 = vmatprep.subr.mxu0 0.0
    %36 = vmatpush1.msra.mxu0 %v18
    %37 = vmatprep.subr.mxu0 0.0
    %38 = vmatpush1.msra.mxu0 %v19
    %39 = vmatprep.subr.mxu0 0.0
    %40 = vmatpush1.msra.mxu0 0.0
    %41 = vmatprep.subr.mxu0 0.0
    %42 = vmatpush1.msra.mxu0 0.0
    %43 = vmatprep.subr.mxu0 0.0
    %44 = vmatpush1.msra.mxu0 0.0
    %45 = vmatprep.subr.mxu0 0.0
    %46 = vmatpush1.msra.mxu0 0.0
    %47 = vmatprep.subr.mxu0 0.0
    %48 = vmatpush1.msra.mxu0 0.0
    %49 = vmatprep.subr.mxu0 0.0
    %50 = vmatpush1.msra.mxu0 0.0
    %51 = vmatprep.subr.mxu0 0.0
    %52 = vmatpush1.msra.mxu0 0.0
    %53 = vmatprep.subr.mxu0 0.0
    %54 = vmatpush1.msra.mxu0 0.0
    %55 = vmatprep.subr.mxu0 0.0
    %56 = vmatpush1.msra.mxu0 0.0
    %57 = vmatprep.subr.mxu0 0.0
    %58 = vmatpush1.msra.mxu0 0.0
    %59 = vmatprep.subr.mxu0 0.0
    %60 = vmatpush1.msra.mxu0 0.0
    %61 = vmatprep.subr.mxu0 0.0
    %62 = vmatpush1.msra.mxu0 0.0
    %63 = vmatprep.subr.mxu0 0.0
    %64 = vmatpush1.msra.mxu0 0.0
    %65 = vmatprep.subr.mxu0 0.0
    %66 = vmatpush1.msra.mxu0 0.0
    %67 = vmatprep.subr.mxu0 0.0
    %68 = vmatpush1.msra.mxu0 0.0
    %69 = vmatprep.subr.mxu0 0.0
    %70 = vmatpush1.msra.mxu0 0.0
    %71 = vmatprep.subr.mxu0 0.0
    %72 = vmatpush1.msra.mxu0 0.0
    %73 = vmatprep.subr.mxu0 0.0
    %74 = vmatpush1.msra.mxu0 0.0
    %75 = vmatprep.subr.mxu0 0.0
    %76 = vmatpush1.msra.mxu0 0.0
    %77 = vmatprep.subr.mxu0 0.0
    %78 = vmatpush1.msra.mxu0 0.0
    %79 = vmatprep.subr.mxu0 0.0
    %80 = vmatpush1.msra.mxu0 0.0
    %81 = vmatprep.subr.mxu0 0.0
    %82 = vmatpush1.msra.mxu0 0.0
    %83 = vmatprep.subr.mxu0 0.0
    %84 = vmatpush1.msra.mxu0 0.0
    %85 = vmatprep.subr.mxu0 0.0
    %86 = vmatpush1.msra.mxu0 0.0
    %87 = vmatprep.subr.mxu0 0.0
    %88 = vmatpush1.msra.mxu0 0.0
    %89 = vmatprep.subr.mxu0 0.0
    %90 = vmatpush1.msra.mxu0 0.0
    %91 = vmatprep.subr.mxu0 0.0
    %92 = vmatpush1.msra.mxu0 0.0
    %93 = vmatprep.subr.mxu0 0.0
    %94 = vmatpush1.msra.mxu0 0.0
    %95 = vmatprep.mubr.f32.mxu0 0.0
    %96 = vmatmul.mubr.f32.gmra.mrb[0].mxu0 %v29
    %v97 = vpop.f32.mrb[0].mxu0
    %v98 = vadd.f32 %v25, %v97
    %v99 = vpop.f32.mrb[0].mxu0
    %100 = vdwg.mxu0
    %vm101 = vcmask 130048
    %102 = vst.msk [vmem:[#allocation2] sm:$0xff] %vm101, %v98
    // Predicated region
    $region14: #{model_linear_forward.1} parent=1 // pred_check
      _
    $region15: #{model_linear_forward.1} parent=1 // pred_check_branch
      %104 = sbr.rel (0) target = $region17
    $region16: #{model_linear_forward.1} parent=1 // pred_region
      %s106 = ssub.s32 128, 128
      %107 = vsyncadd [#allocation3], %s106
      %s109 = sshll.u32 [#allocation2], 4
      %s110 = int_to_ptr.vmem [resolvable:$true] %s109
      %112 = dma.vmem_to_hbm [thread:$0]  %s110, 128, %s3, [#allocation3]
    $region17: #{model_linear_forward.1} parent=1 // pred_fallthru
      _
    // Predicated region
    $region18: #{model_linear_forward.1} parent=1 // pred_check
      _
    $region19: #{model_linear_forward.1} parent=1 // pred_check_branch
      %114 = sbr.rel (0) target = $region21
    $region20: #{model_linear_forward.1} parent=1 // pred_region
      %115 = dma.done [#allocation3], 128
    $region21: #{model_linear_forward.1} parent=1 // pred_fallthru
      _
    %116 = vsyncpa [#allocation3], 1

</llo_original>
